<compile_context>
chip_gen: v6e
topology: v6e:2x2x1
jax: 0.10.0
libtpu: 0.0.40
codegen_flags: <defaults>
</compile_context>

<pallas_src>
import functools

import jax
import jax.numpy as jnp
from jax import lax
from jax.experimental import pallas as pl
from jax.experimental.pallas import tpu as pltpu

NUM_GROUPS = 8
EPS = 1e-6


# --------------------------------------------------------------------------
# Main fused kernel: one block = (cb, HWp) = gb whole groups of one batch item
# --------------------------------------------------------------------------
def _gn_kernel(x_ref, gamma_ref, beta_ref, o_ref, *, cg, inv_n, eps):
    # x_ref:               (cb, HWp)  -- cb = gb * cg channels, HWp lane-dense
    # gamma_ref, beta_ref: (cb, 1)
    cb, _ = x_ref.shape
    gb = cb // cg

    # One streaming pass: per-channel sum / sum-of-squares with f32 accumulation.
    xf = x_ref[...].astype(jnp.float32)
    s_c = jnp.sum(xf, axis=-1, keepdims=True)        # (cb, 1)
    ss_c = jnp.sum(xf * xf, axis=-1, keepdims=True)  # (cb, 1)
    # xf is dead after this point (output below re-reads x_ref), so the big f32
    # temporary does not sit on top of the double-buffered in/out blocks.

    # Fold channels -> groups -> channels with an unrolled static-slice sublane
    # reduce + iota/where broadcast (no MXU, exact f32).  gb <= num_groups.
    row = lax.broadcasted_iota(jnp.int32, (cb, 1), 0)
    mean_c = jnp.zeros((cb, 1), jnp.float32)
    inv_std_c = jnp.zeros((cb, 1), jnp.float32)
    for g in range(gb):                                   # static unroll
        lo, hi = g * cg, (g + 1) * cg
        mean_g = jnp.sum(s_c[lo:hi, :], axis=0, keepdims=True) * inv_n   # (1,1)
        ex2_g = jnp.sum(ss_c[lo:hi, :], axis=0, keepdims=True) * inv_n   # (1,1)
        var_g = jnp.maximum(ex2_g - mean_g * mean_g, 0.0)
        inv_std_g = lax.rsqrt(var_g + eps)
        in_g = jnp.logical_and(row >= lo, row < hi)
        mean_c = jnp.where(in_g, mean_g, mean_c)
        inv_std_c = jnp.where(in_g, inv_std_g, inv_std_c)

    gamma = gamma_ref[...].astype(jnp.float32)
    beta = beta_ref[...].astype(jnp.float32)
    scale = gamma * inv_std_c                              # (cb, 1)
    shift = beta - mean_c * scale                          # (cb, 1)

    # Re-read x (cheap VMEM load) -> 2 VPU ops/element, lane-dense store.
    o_ref[...] = (x_ref[...].astype(jnp.float32) * scale + shift).astype(o_ref.dtype)


# --------------------------------------------------------------------------
# Spatial-tiled fallback (huge H*W): phase 1 accumulates per-group sum/sumsq
# over HW tiles; phase 2 streams x*scale+shift.
# --------------------------------------------------------------------------
def _gn_stats_kernel(x_ref, st_ref):
    # x_ref: (Cg, hw_tile); st_ref: (8, 128) f32 accumulator
    #   row 0 = running sum, row 1 = running sum of squares (broadcast over lanes)
    t = pl.program_id(1)

    @pl.when(t == 0)
    def _():
        st_ref[...] = jnp.zeros_like(st_ref)

    xf = x_ref[...].astype(jnp.float32)
    s = jnp.sum(xf, keepdims=True)          # (1, 1)
    ss = jnp.sum(xf * xf, keepdims=True)    # (1, 1)
    row = lax.broadcasted_iota(jnp.int32, (8, 128), 0)
    st_ref[...] = st_ref[...] + jnp.where(row == 0, s, 0.0) + jnp.where(row == 1, ss, 0.0)


def _gn_apply_kernel(x_ref, scale_ref, shift_ref, o_ref):
    # x_ref: (C, hw_tile); scale/shift: (C, 1) f32
    o_ref[...] = (x_ref[...].astype(jnp.float32) * scale_ref[...]
                  + shift_ref[...]).astype(o_ref.dtype)


# --------------------------------------------------------------------------
# Wrapper
# --------------------------------------------------------------------------
def _vmem_capacity_bytes():
    try:
        cap = int(pltpu.get_tpu_info().vmem_capacity_bytes)
        if cap > 0:
            return cap
    except Exception:
        pass
    return 64 << 20  # conservative default (v7x per-TensorCore VMEM)


def _choose_split(C, G, resid_fn, budget):
    """Smallest S | G whose (C//S, HWp) block fits `budget`; prefer S>=2 so the
    v7x megacore always has parallel work.  Block channel count must be a
    multiple of 8 (sublane-dense) unless S == 1 (full-extent block)."""
    divisors = [s for s in range(1, G + 1) if G % s == 0]
    valid = [s for s in divisors if s == 1 or (C // s) % 8 == 0]
    prefer_min = 2 if (G % 2 == 0 and (C // 2) % 8 == 0) else 1
    for s in valid:
        if s >= prefer_min and resid_fn(C // s) <= budget:
            return s
    for s in valid:
        if resid_fn(C // s) <= budget:
            return s
    return None  # -> spatial-tiled fallback


def _group_norm_tiled(x3, g2, b2, *, num_groups, eps, hw, itemsize, budget, vmem_ceiling):
    """Two-phase fallback when even one group slab (Cg, HWp) exceeds the budget."""
    N, C, HWp = x3.shape
    G = num_groups
    Cg = C // G

    # hw_tile: a multiple of 128 that divides HWp and fits the budget.
    k = HWp // 128
    lane_bytes = C * (4 * itemsize + 8)
    d_max = max(1, int(budget // lane_bytes) // 128)
    d = 1
    for cand in range(1, k + 1):
        if k % cand == 0 and cand <= d_max:
            d = cand
    hw_tile = 128 * d
    n_t = HWp // hw_tile

    vmem_limit = int(min(max(C * hw_tile * (4 * itemsize + 8) + (8 << 20), 32 << 20),
                         vmem_ceiling))

    # Phase 1: per-(n, g) sum / sumsq accumulated over HW tiles.
    # TODO(synk): further headroom — batch all groups of one batch element per
    # stats block to avoid sublane-starved (Cg, hw_tile) tiles when Cg < 8.
    x5 = x3.reshape(N * G, Cg, HWp)
    stats = pl.pallas_call(
        _gn_stats_kernel,
        out_shape=jax.ShapeDtypeStruct((N * G, 8, 128), jnp.float32),
        grid_spec=pltpu.PrefetchScalarGridSpec(
            num_scalar_prefetch=0,
            grid=(N * G, n_t),
            in_specs=[pl.BlockSpec((None, Cg, hw_tile), lambda i, t: (i, 0, t))],
            out_specs=pl.BlockSpec((None, 8, 128), lambda i, t: (i, 0, 0)),
        ),
        compiler_params=pltpu.CompilerParams(
            dimension_semantics=("parallel", "arbitrary"),
            vmem_limit_bytes=vmem_limit,
        ),
    )(x5)

    inv_n = 1.0 / float(Cg * hw)
    s_g = stats[:, 0, 0].reshape(N, G, 1)
    ss_g = stats[:, 1, 0].reshape(N, G, 1)
    mean_g = s_g * inv_n
    var_g = jnp.maximum(ss_g * inv_n - mean_g * mean_g, 0.0)
    inv_std_g = lax.rsqrt(var_g + eps)

    gamma_c = g2.reshape(1, G, Cg).astype(jnp.float32)
    beta_c = b2.reshape(1, G, Cg).astype(jnp.float32)
    scale = (gamma_c * inv_std_g).reshape(N, C, 1)
    shift = (beta_c - gamma_c * mean_g * inv_std_g).reshape(N, C, 1)

    # Phase 2: streaming normalize.
    out = pl.pallas_call(
        _gn_apply_kernel,
        out_shape=jax.ShapeDtypeStruct((N, C, HWp), x3.dtype),
        grid_spec=pltpu.PrefetchScalarGridSpec(
            num_scalar_prefetch=0,
            grid=(N, n_t),
            in_specs=[
                pl.BlockSpec((None, C, hw_tile), lambda n, t: (n, 0, t)),
                pl.BlockSpec((None, C, 1), lambda n, t: (n, 0, 0)),
                pl.BlockSpec((None, C, 1), lambda n, t: (n, 0, 0)),
            ],
            out_specs=pl.BlockSpec((None, C, hw_tile), lambda n, t: (n, 0, t)),
        ),
        compiler_params=pltpu.CompilerParams(
            dimension_semantics=("parallel", "parallel"),
            vmem_limit_bytes=vmem_limit,
        ),
    )(x3, scale, shift)
    return out


def group_norm_block(x, gamma, beta, *, num_groups=NUM_GROUPS, eps=EPS,
                     vmem_budget_bytes=None):
    """GroupNorm forward. x: (N, C, H, W); gamma, beta: (C,)."""
    N, C, H, W = x.shape
    G = num_groups
    assert C % G == 0, "channels must be divisible by num_groups"
    Cg = C // G
    HW = H * W
    HWp = -(-HW // 128) * 128                 # lane-dense spatial extent
    itemsize = x.dtype.itemsize

    x3 = x.reshape(N, C, HW)                  # free reshape (NCHW contiguous)
    if HWp != HW:
        x3 = jnp.pad(x3, ((0, 0), (0, 0), (0, HWp - HW)))   # zero lanes: sums unaffected

    cap = _vmem_capacity_bytes()
    if vmem_budget_bytes is None:
        vmem_budget_bytes = int(0.60 * cap)   # target block residency
    vmem_ceiling = int(0.75 * cap)            # 48 MiB on v7x, 96 MiB on v5e/v6e

    # Residency per block: in/out double-buffered in input dtype + ~2 transient
    # f32 copies while computing.
    def resid(ch_per_block):
        return ch_per_block * HWp * (4 * itemsize + 8)

    inv_n = 1.0 / float(Cg * HW)              # true element count (ignores padding)
    g2 = gamma.reshape(C, 1)
    b2 = beta.reshape(C, 1)

    S = _choose_split(C, G, resid, vmem_budget_bytes)

    if S is not None:
        CB = C // S
        kernel = functools.partial(_gn_kernel, cg=Cg, inv_n=inv_n, eps=eps)
        vmem_limit = int(min(max(resid(CB) + (8 << 20), 32 << 20), vmem_ceiling))
        cost = pl.CostEstimate(
            flops=int(5 * N * C * HWp),
            transcendentals=int(N * C),
            bytes_accessed=int(2 * N * C * HWp * itemsize + 8 * C),
        )
        out = pl.pallas_call(
            kernel,
            out_shape=jax.ShapeDtypeStruct((N, C, HWp), x.dtype),
            grid_spec=pltpu.PrefetchScalarGridSpec(
                num_scalar_prefetch=0,
                grid=(N, S),
                in_specs=[
                    pl.BlockSpec((None, CB, HWp), lambda n, s: (n, s, 0)),
                    pl.BlockSpec((CB, 1), lambda n, s: (s, 0)),
                    pl.BlockSpec((CB, 1), lambda n, s: (s, 0)),
                ],
                out_specs=pl.BlockSpec((None, CB, HWp), lambda n, s: (n, s, 0)),
            ),
            compiler_params=pltpu.CompilerParams(
                dimension_semantics=("parallel", "parallel"),
                vmem_limit_bytes=vmem_limit,
            ),
            cost_estimate=cost,
        )(x3, g2, b2)
    else:
        out = _group_norm_tiled(x3, g2, b2, num_groups=G, eps=eps, hw=HW,
                                itemsize=itemsize, budget=vmem_budget_bytes,
                                vmem_ceiling=vmem_ceiling)

    if HWp != HW:
        out = out[:, :, :HW]
    return out.reshape(N, C, H, W)


def group_norm_ref(x, gamma, beta, *, num_groups=NUM_GROUPS, eps=EPS):
    """Pure-JAX reference matching torch.nn.GroupNorm."""
    N, C, H, W = x.shape
    xg = x.reshape(N, num_groups, -1).astype(jnp.float32)
    mean = jnp.mean(xg, axis=-1, keepdims=True)
    var = jnp.mean((xg - mean) ** 2, axis=-1, keepdims=True)
    xn = ((xg - mean) * lax.rsqrt(var + eps)).reshape(N, C, H, W)
    return (xn * gamma.reshape(1, C, 1, 1) + beta.reshape(1, C, 1, 1)).astype(x.dtype)


if __name__ == "__main__":
    key = jax.random.PRNGKey(0)
    kx, kg, kb, kx2, kx3 = jax.random.split(key, 5)

    # num_channels must be divisible by the 8 groups.
    N, C, H, W = 2, 16, 16, 16
    x = jax.random.normal(kx, (N, C, H, W), dtype=jnp.float32)
    gamma = 1.0 + 0.1 * jax.random.normal(kg, (C,), dtype=jnp.float32)
    beta = 0.1 * jax.random.normal(kb, (C,), dtype=jnp.float32)
    ref = group_norm_ref(x, gamma, beta)

    # 1) Main path: lane-dense HW (256), grid=(N, 2) megacore split, 8-ch blocks.
    out = jax.block_until_ready(group_norm_block(x, gamma, beta))
    assert jnp.allclose(out, ref, atol=1e-4, rtol=1e-4), "main path mismatch"

    # 2) HW not a multiple of 128 (10*10=100): lane-padding path.
    x2 = jax.random.normal(kx2, (N, C, 10, 10), dtype=jnp.float32)
    ref2 = group_norm_ref(x2, gamma, beta)
    out2 = jax.block_until_ready(group_norm_block(x2, gamma, beta))
    assert jnp.allclose(out2, ref2, atol=1e-4, rtol=1e-4), "padded-HW mismatch"

    # 3) Forced small budget -> single-group-per-block path (S = num_groups).
    C3 = 64
    g3 = 1.0 + 0.1 * jax.random.normal(kg, (C3,), dtype=jnp.float32)
    b3 = 0.1 * jax.random.normal(kb, (C3,), dtype=jnp.float32)
    x3 = jax.random.normal(kx3, (N, C3, 8, 8), dtype=jnp.float32)
    ref3 = group_norm_ref(x3, g3, b3)
    out3 = jax.block_until_ready(
        group_norm_block(x3, g3, b3, vmem_budget_bytes=30000))
    assert jnp.allclose(out3, ref3, atol=1e-4, rtol=1e-4), "per-group path mismatch"

    # 4) Forced tiny budget -> spatial-tiled two-phase fallback.
    out4 = jax.block_until_ready(
        group_norm_block(x, gamma, beta, vmem_budget_bytes=1024))
    assert jnp.allclose(out4, ref, atol=1e-4, rtol=1e-4), "tiled fallback mismatch"

    # 5) bf16 input (stats in f32, no full-slab f32 copy kept live).
    xb = x.astype(jnp.bfloat16)
    refb = group_norm_ref(xb, gamma, beta).astype(jnp.float32)
    outb = jax.block_until_ready(group_norm_block(xb, gamma, beta)).astype(jnp.float32)
    assert jnp.allclose(outb, refb, atol=2e-2, rtol=2e-2), "bf16 mismatch"

    print("KERNEL_OK")
</pallas_src>

<mosaic_0001>
module attributes {stable_mosaic.version = 11 : i64} {
  func.func @_gn_kernel(%arg0: i32, %arg1: i32, %arg2: memref<1x8x256xf32, #tpu.memory_space<vmem>>, %arg3: memref<8x1xf32, #tpu.memory_space<vmem>>, %arg4: memref<8x1xf32, #tpu.memory_space<vmem>>, %arg5: memref<1x8x256xf32, #tpu.memory_space<vmem>>) attributes {dimension_semantics = [#tpu.dimension_semantics<parallel>, #tpu.dimension_semantics<parallel>], iteration_bounds = array<i64: 2, 2>, scalar_prefetch = 0 : i64, scratch_operands = 0 : i64, tpu.core_type = #tpu.core_type<tc>, window_params = [{transform_indices = @transform_0, window_bounds = array<i64: 1, 8, 256>}, {transform_indices = @transform_1, window_bounds = array<i64: 8, 1>}, {transform_indices = @transform_2, window_bounds = array<i64: 8, 1>}, {transform_indices = @transform_3, window_bounds = array<i64: 1, 8, 256>}]} {
    %c0 = arith.constant 0 : index
    %c0_0 = arith.constant 0 : index
    %c0_1 = arith.constant 0 : index
    %0 = vector.load %arg2[%c0, %c0_0, %c0_1] : memref<1x8x256xf32, #tpu.memory_space<vmem>>, vector<1x8x256xf32>
    %1 = vector.shape_cast %0 : vector<1x8x256xf32> to vector<8x256xf32>
    %cst = arith.constant dense<0.000000e+00> : vector<8xf32>
    %2 = vector.multi_reduction <add>, %1, %cst [1] : vector<8x256xf32> to vector<8xf32>
    %3 = vector.shape_cast %2 : vector<8xf32> to vector<8x1xf32>
    %4 = arith.mulf %1, %1 : vector<8x256xf32>
    %cst_2 = arith.constant dense<0.000000e+00> : vector<8xf32>
    %5 = vector.multi_reduction <add>, %4, %cst_2 [1] : vector<8x256xf32> to vector<8xf32>
    %6 = vector.shape_cast %5 : vector<8xf32> to vector<8x1xf32>
    %7 = tpu.iota {dimensions = array<i32: 0>} : vector<8x1xi32>
    %cst_3 = arith.constant 0.000000e+00 : f32
    %8 = vector.broadcast %cst_3 : f32 to vector<8x1xf32>
    %cst_4 = arith.constant 0.000000e+00 : f32
    %9 = vector.broadcast %cst_4 : f32 to vector<8x1xf32>
    %10 = vector.extract_strided_slice %3 {offsets = [0, 0], sizes = [2, 1], strides = [1, 1]} : vector<8x1xf32> to vector<2x1xf32>
    %cst_5 = arith.constant dense<0.000000e+00> : vector<1xf32>
    %11 = vector.multi_reduction <add>, %10, %cst_5 [0] : vector<2x1xf32> to vector<1xf32>
    %12 = vector.shape_cast %11 : vector<1xf32> to vector<1x1xf32>
    %cst_6 = arith.constant 0.001953125 : f32
    %13 = vector.broadcast %cst_6 : f32 to vector<1x1xf32>
    %14 = arith.mulf %12, %13 : vector<1x1xf32>
    %15 = vector.extract_strided_slice %6 {offsets = [0, 0], sizes = [2, 1], strides = [1, 1]} : vector<8x1xf32> to vector<2x1xf32>
    %cst_7 = arith.constant dense<0.000000e+00> : vector<1xf32>
    %16 = vector.multi_reduction <add>, %15, %cst_7 [0] : vector<2x1xf32> to vector<1xf32>
    %17 = vector.shape_cast %16 : vector<1xf32> to vector<1x1xf32>
    %cst_8 = arith.constant 0.001953125 : f32
    %18 = vector.broadcast %cst_8 : f32 to vector<1x1xf32>
    %19 = arith.mulf %17, %18 : vector<1x1xf32>
    %20 = arith.mulf %14, %14 : vector<1x1xf32>
    %21 = arith.subf %19, %20 : vector<1x1xf32>
    %cst_9 = arith.constant 0.000000e+00 : f32
    %22 = vector.broadcast %cst_9 : f32 to vector<1x1xf32>
    %23 = arith.maximumf %21, %22 : vector<1x1xf32>
    %cst_10 = arith.constant 9.99999997E-7 : f32
    %24 = vector.broadcast %cst_10 : f32 to vector<1x1xf32>
    %25 = arith.addf %23, %24 : vector<1x1xf32>
    %26 = math.rsqrt %25 : vector<1x1xf32>
    %c0_i32 = arith.constant 0 : i32
    %27 = vector.broadcast %c0_i32 : i32 to vector<8x1xi32>
    %28 = arith.cmpi sge, %7, %27 : vector<8x1xi32>
    %c2_i32 = arith.constant 2 : i32
    %29 = vector.broadcast %c2_i32 : i32 to vector<8x1xi32>
    %30 = arith.cmpi slt, %7, %29 : vector<8x1xi32>
    %31 = arith.andi %28, %30 : vector<8x1xi1>
    %32 = vector.shape_cast %14 : vector<1x1xf32> to vector<1x1xf32>
    %33 = vector.broadcast %32 : vector<1x1xf32> to vector<8x1xf32>
    %34 = arith.select %31, %33, %8 : vector<8x1xi1>, vector<8x1xf32>
    %35 = vector.shape_cast %26 : vector<1x1xf32> to vector<1x1xf32>
    %36 = vector.broadcast %35 : vector<1x1xf32> to vector<8x1xf32>
    %37 = arith.select %31, %36, %9 : vector<8x1xi1>, vector<8x1xf32>
    %38 = vector.extract_strided_slice %3 {offsets = [2, 0], sizes = [2, 1], strides = [1, 1]} : vector<8x1xf32> to vector<2x1xf32>
    %cst_11 = arith.constant dense<0.000000e+00> : vector<1xf32>
    %39 = vector.multi_reduction <add>, %38, %cst_11 [0] : vector<2x1xf32> to vector<1xf32>
    %40 = vector.shape_cast %39 : vector<1xf32> to vector<1x1xf32>
    %cst_12 = arith.constant 0.001953125 : f32
    %41 = vector.broadcast %cst_12 : f32 to vector<1x1xf32>
    %42 = arith.mulf %40, %41 : vector<1x1xf32>
    %43 = vector.extract_strided_slice %6 {offsets = [2, 0], sizes = [2, 1], strides = [1, 1]} : vector<8x1xf32> to vector<2x1xf32>
    %cst_13 = arith.constant dense<0.000000e+00> : vector<1xf32>
    %44 = vector.multi_reduction <add>, %43, %cst_13 [0] : vector<2x1xf32> to vector<1xf32>
    %45 = vector.shape_cast %44 : vector<1xf32> to vector<1x1xf32>
    %cst_14 = arith.constant 0.001953125 : f32
    %46 = vector.broadcast %cst_14 : f32 to vector<1x1xf32>
    %47 = arith.mulf %45, %46 : vector<1x1xf32>
    %48 = arith.mulf %42, %42 : vector<1x1xf32>
    %49 = arith.subf %47, %48 : vector<1x1xf32>
    %cst_15 = arith.constant 0.000000e+00 : f32
    %50 = vector.broadcast %cst_15 : f32 to vector<1x1xf32>
    %51 = arith.maximumf %49, %50 : vector<1x1xf32>
    %cst_16 = arith.constant 9.99999997E-7 : f32
    %52 = vector.broadcast %cst_16 : f32 to vector<1x1xf32>
    %53 = arith.addf %51, %52 : vector<1x1xf32>
    %54 = math.rsqrt %53 : vector<1x1xf32>
    %c2_i32_17 = arith.constant 2 : i32
    %55 = vector.broadcast %c2_i32_17 : i32 to vector<8x1xi32>
    %56 = arith.cmpi sge, %7, %55 : vector<8x1xi32>
    %c4_i32 = arith.constant 4 : i32
    %57 = vector.broadcast %c4_i32 : i32 to vector<8x1xi32>
    %58 = arith.cmpi slt, %7, %57 : vector<8x1xi32>
    %59 = arith.andi %56, %58 : vector<8x1xi1>
    %60 = vector.shape_cast %42 : vector<1x1xf32> to vector<1x1xf32>
    %61 = vector.broadcast %60 : vector<1x1xf32> to vector<8x1xf32>
    %62 = arith.select %59, %61, %34 : vector<8x1xi1>, vector<8x1xf32>
    %63 = vector.shape_cast %54 : vector<1x1xf32> to vector<1x1xf32>
    %64 = vector.broadcast %63 : vector<1x1xf32> to vector<8x1xf32>
    %65 = arith.select %59, %64, %37 : vector<8x1xi1>, vector<8x1xf32>
    %66 = vector.extract_strided_slice %3 {offsets = [4, 0], sizes = [2, 1], strides = [1, 1]} : vector<8x1xf32> to vector<2x1xf32>
    %cst_18 = arith.constant dense<0.000000e+00> : vector<1xf32>
    %67 = vector.multi_reduction <add>, %66, %cst_18 [0] : vector<2x1xf32> to vector<1xf32>
    %68 = vector.shape_cast %67 : vector<1xf32> to vector<1x1xf32>
    %cst_19 = arith.constant 0.001953125 : f32
    %69 = vector.broadcast %cst_19 : f32 to vector<1x1xf32>
    %70 = arith.mulf %68, %69 : vector<1x1xf32>
    %71 = vector.extract_strided_slice %6 {offsets = [4, 0], sizes = [2, 1], strides = [1, 1]} : vector<8x1xf32> to vector<2x1xf32>
    %cst_20 = arith.constant dense<0.000000e+00> : vector<1xf32>
    %72 = vector.multi_reduction <add>, %71, %cst_20 [0] : vector<2x1xf32> to vector<1xf32>
    %73 = vector.shape_cast %72 : vector<1xf32> to vector<1x1xf32>
    %cst_21 = arith.constant 0.001953125 : f32
    %74 = vector.broadcast %cst_21 : f32 to vector<1x1xf32>
    %75 = arith.mulf %73, %74 : vector<1x1xf32>
    %76 = arith.mulf %70, %70 : vector<1x1xf32>
    %77 = arith.subf %75, %76 : vector<1x1xf32>
    %cst_22 = arith.constant 0.000000e+00 : f32
    %78 = vector.broadcast %cst_22 : f32 to vector<1x1xf32>
    %79 = arith.maximumf %77, %78 : vector<1x1xf32>
    %cst_23 = arith.constant 9.99999997E-7 : f32
    %80 = vector.broadcast %cst_23 : f32 to vector<1x1xf32>
    %81 = arith.addf %79, %80 : vector<1x1xf32>
    %82 = math.rsqrt %81 : vector<1x1xf32>
    %c4_i32_24 = arith.constant 4 : i32
    %83 = vector.broadcast %c4_i32_24 : i32 to vector<8x1xi32>
    %84 = arith.cmpi sge, %7, %83 : vector<8x1xi32>
    %c6_i32 = arith.constant 6 : i32
    %85 = vector.broadcast %c6_i32 : i32 to vector<8x1xi32>
    %86 = arith.cmpi slt, %7, %85 : vector<8x1xi32>
    %87 = arith.andi %84, %86 : vector<8x1xi1>
    %88 = vector.shape_cast %70 : vector<1x1xf32> to vector<1x1xf32>
    %89 = vector.broadcast %88 : vector<1x1xf32> to vector<8x1xf32>
    %90 = arith.select %87, %89, %62 : vector<8x1xi1>, vector<8x1xf32>
    %91 = vector.shape_cast %82 : vector<1x1xf32> to vector<1x1xf32>
    %92 = vector.broadcast %91 : vector<1x1xf32> to vector<8x1xf32>
    %93 = arith.select %87, %92, %65 : vector<8x1xi1>, vector<8x1xf32>
    %94 = vector.extract_strided_slice %3 {offsets = [6, 0], sizes = [2, 1], strides = [1, 1]} : vector<8x1xf32> to vector<2x1xf32>
    %cst_25 = arith.constant dense<0.000000e+00> : vector<1xf32>
    %95 = vector.multi_reduction <add>, %94, %cst_25 [0] : vector<2x1xf32> to vector<1xf32>
    %96 = vector.shape_cast %95 : vector<1xf32> to vector<1x1xf32>
    %cst_26 = arith.constant 0.001953125 : f32
    %97 = vector.broadcast %cst_26 : f32 to vector<1x1xf32>
    %98 = arith.mulf %96, %97 : vector<1x1xf32>
    %99 = vector.extract_strided_slice %6 {offsets = [6, 0], sizes = [2, 1], strides = [1, 1]} : vector<8x1xf32> to vector<2x1xf32>
    %cst_27 = arith.constant dense<0.000000e+00> : vector<1xf32>
    %100 = vector.multi_reduction <add>, %99, %cst_27 [0] : vector<2x1xf32> to vector<1xf32>
    %101 = vector.shape_cast %100 : vector<1xf32> to vector<1x1xf32>
    %cst_28 = arith.constant 0.001953125 : f32
    %102 = vector.broadcast %cst_28 : f32 to vector<1x1xf32>
    %103 = arith.mulf %101, %102 : vector<1x1xf32>
    %104 = arith.mulf %98, %98 : vector<1x1xf32>
    %105 = arith.subf %103, %104 : vector<1x1xf32>
    %cst_29 = arith.constant 0.000000e+00 : f32
    %106 = vector.broadcast %cst_29 : f32 to vector<1x1xf32>
    %107 = arith.maximumf %105, %106 : vector<1x1xf32>
    %cst_30 = arith.constant 9.99999997E-7 : f32
    %108 = vector.broadcast %cst_30 : f32 to vector<1x1xf32>
    %109 = arith.addf %107, %108 : vector<1x1xf32>
    %110 = math.rsqrt %109 : vector<1x1xf32>
    %c6_i32_31 = arith.constant 6 : i32
    %111 = vector.broadcast %c6_i32_31 : i32 to vector<8x1xi32>
    %112 = arith.cmpi sge, %7, %111 : vector<8x1xi32>
    %c8_i32 = arith.constant 8 : i32
    %113 = vector.broadcast %c8_i32 : i32 to vector<8x1xi32>
    %114 = arith.cmpi slt, %7, %113 : vector<8x1xi32>
    %115 = arith.andi %112, %114 : vector<8x1xi1>
    %116 = vector.shape_cast %98 : vector<1x1xf32> to vector<1x1xf32>
    %117 = vector.broadcast %116 : vector<1x1xf32> to vector<8x1xf32>
    %118 = arith.select %115, %117, %90 : vector<8x1xi1>, vector<8x1xf32>
    %119 = vector.shape_cast %110 : vector<1x1xf32> to vector<1x1xf32>
    %120 = vector.broadcast %119 : vector<1x1xf32> to vector<8x1xf32>
    %121 = arith.select %115, %120, %93 : vector<8x1xi1>, vector<8x1xf32>
    %c0_32 = arith.constant 0 : index
    %c0_33 = arith.constant 0 : index
    %122 = vector.load %arg3[%c0_32, %c0_33] : memref<8x1xf32, #tpu.memory_space<vmem>>, vector<8x1xf32>
    %c0_34 = arith.constant 0 : index
    %c0_35 = arith.constant 0 : index
    %123 = vector.load %arg4[%c0_34, %c0_35] : memref<8x1xf32, #tpu.memory_space<vmem>>, vector<8x1xf32>
    %124 = arith.mulf %122, %121 : vector<8x1xf32>
    %125 = arith.mulf %118, %124 : vector<8x1xf32>
    %126 = arith.subf %123, %125 : vector<8x1xf32>
    %c0_36 = arith.constant 0 : index
    %c0_37 = arith.constant 0 : index
    %c0_38 = arith.constant 0 : index
    %127 = vector.load %arg2[%c0_36, %c0_37, %c0_38] : memref<1x8x256xf32, #tpu.memory_space<vmem>>, vector<1x8x256xf32>
    %128 = vector.shape_cast %127 : vector<1x8x256xf32> to vector<8x256xf32>
    %129 = vector.broadcast %124 : vector<8x1xf32> to vector<8x256xf32>
    %130 = arith.mulf %128, %129 : vector<8x256xf32>
    %131 = vector.broadcast %126 : vector<8x1xf32> to vector<8x256xf32>
    %132 = arith.addf %130, %131 : vector<8x256xf32>
    %c0_39 = arith.constant 0 : index
    %c0_40 = arith.constant 0 : index
    %c0_41 = arith.constant 0 : index
    %133 = vector.load %arg5[%c0_39, %c0_40, %c0_41] : memref<1x8x256xf32, #tpu.memory_space<vmem>>, vector<1x8x256xf32>
    %134 = vector.shape_cast %133 : vector<1x8x256xf32> to vector<8x256xf32>
    %135 = vector.shape_cast %132 : vector<8x256xf32> to vector<1x8x256xf32>
    tpu.vector_store %arg5[%c0_39, %c0_40, %c0_41], %135 {strides = array<i32>} : memref<1x8x256xf32, #tpu.memory_space<vmem>>, vector<1x8x256xf32>,
    return
  }
  func.func @transform_0(%arg0: i32, %arg1: i32) -> (i32, i32, i32) {
    %c0_i32 = arith.constant 0 : i32
    %c0_i32_0 = arith.constant 0 : i32
    return %arg0, %arg1, %c0_i32 : i32, i32, i32
  }
  func.func @transform_1(%arg0: i32, %arg1: i32) -> (i32, i32) {
    %c0_i32 = arith.constant 0 : i32
    %c0_i32_0 = arith.constant 0 : i32
    return %arg1, %c0_i32 : i32, i32
  }
  func.func @transform_2(%arg0: i32, %arg1: i32) -> (i32, i32) {
    %c0_i32 = arith.constant 0 : i32
    %c0_i32_0 = arith.constant 0 : i32
    return %arg1, %c0_i32 : i32, i32
  }
  func.func @transform_3(%arg0: i32, %arg1: i32) -> (i32, i32, i32) {
    %c0_i32 = arith.constant 0 : i32
    %c0_i32_0 = arith.constant 0 : i32
    return %arg0, %arg1, %c0_i32 : i32, i32, i32
  }
}

</mosaic_0001>

<llo_original>
// kernel: tpu_custom_call.1
$region0: #{tpu_custom_call.1}
  #allocation0 [shape = 'u32[]', space=smem, size = 0x4, offset = 0x4, fixed_abs, tag = 'smem constant byte address 0x4 - core index']
  #allocation1 [shape = 'u32[144,128]{1,0:T(1,128)}', space=vmem, size = 0x12000, scoped, tag = 'internal scratch']
  %s0 = inlined_call_operand.hbm [shape: f32[2,16,256], index: 0, kind: input, shape index: {}]
  %s1 = inlined_call_operand.vmem [shape: f32[16,1], index: 1, kind: input, shape index: {}]
  %s2 = inlined_call_operand.vmem [shape: f32[16,1], index: 2, kind: input, shape index: {}]
  %s3 = inlined_call_operand.hbm [shape: f32[2,16,256], index: 3, kind: output, shape index: {}]
  %s4 = sld [smem:[#allocation0]]
  $region49: #{tpu_custom_call.1} parent=0
    _
  %s6 = ssub.s32 1, %s4
  %s7 = scalar_select 0, %s6, %s4
  $region1: #{tpu_custom_call.1} parent=0
    #allocation2 [shape = 'u8[16384]{0}', space=vmem, size = 0x4000, scoped, tag = 'input window, operand 0']
    #allocation3 [shape = 's32[2]{0}', space=sflag, size = 0x8, scoped, tag = 'scoped memory for tpu_custom_call.1']
    #allocation4 [shape = 's32[2]{0}', space=sflag, size = 0x8, scoped, tag = 'scoped memory for tpu_custom_call.1']
    #allocation5 [shape = 'u8[16384]{0}', space=vmem, size = 0x4000, scoped, tag = 'output window, operand 0']
    %8 = vsyncpa [#allocation3], 0
    %s9 = scalar_lea.sflag [#allocation3], 1
    %10 = vsyncpa %s9, 0
    %11 = vsyncpa [#allocation4], 0
    %s12 = scalar_lea.sflag [#allocation4], 1
    %13 = vsyncpa %s12, 0
    loop: start=0, step=1, limit=6
    $region2: #{tpu_custom_call.1} parent=1 // loop_pre_header
      _
    $region3: #{tpu_custom_call.1} parent=1 // loop_header
      %s15 = sphi 0, %s19
      %p16 = scmp.ge.s32.totalorder %s15, 6
      %s22 = sphi 0, %s34
      %s23 = sphi 0, %s30
      %s24 = sphi 0, %s22
      %s25 = sphi 0, %s23
      %s26 = sphi 0, %s24
      %s27 = sphi 0, %s25
      %s39 = sphi 0, %s41
      %s42 = sphi 0, %s39
      %s43 = sphi 0, %s42
      %s59 = sphi 0, %s43
      %s65 = sphi 0, %s67
      %s68 = sphi 0, %s65
      %s69 = sphi 0, %s68
      %s85 = sphi 0, %s69
      %s91 = sphi 0, %s93
      %s94 = sphi 0, %s91
      %s95 = sphi 0, %s94
      %s111 = sphi 0, %s95
      %s119 = sphi 0, %s121
      %s122 = sphi 0, %s119
      %s123 = sphi 0, %s122
      %s139 = sphi 0, %s123
    $region4: #{tpu_custom_call.1} parent=1 // loop_header_branch
      %18 = sbr.rel (%p16) target = $region8
    $region5: #{tpu_custom_call.1} parent=1 // loop_body
      %s20 = ssub.s32 %s15, 1
      %s21 = ssub.s32 %s15, 2
      %s28 = sadd.s32 1, %s23
      %p29 = scmp.ge.s32.totalorder %s28, 2
      %s30 = scalar_select %p29, 0, %s28
      %s31 = sadd.s32 1, %s22
      %s32 = scalar_select %p29, %s31, %s22
      %p33 = scmp.ge.s32.totalorder %s32, 2
      %s34 = scalar_select %p33, 0, %s32
      %s35 = ssub.s32 %s22, %s34
      %s36 = ssub.s32 %s23, %s30
      %s37 = sor.u32 %s35, %s36
      %p38 = scmp.eq.s32.totalorder %s37, 0
      %s40 = sadd.s32 %s39, 1
      %s41 = scalar_select %p38, %s39, %s40
      %p44 = pneg %p38
      %p45 = scmp.eq.s32.totalorder %s15, 3
      %p46 = por %p44, %p45
      %p47 = scmp.ne.s32.totalorder %s39, %s42
      %p48 = scmp.eq.s32.totalorder %s15, 0
      %p49 = por %p47, %p48
      %p50 = scmp.ne.s32.totalorder %s39, %s42
      %p51 = scmp.eq.s32.totalorder %s20, 3
      %p52 = por %p50, %p51
      %p53 = scmp.ne.s32.totalorder %s42, %s43
      %p54 = scmp.eq.s32.totalorder %s20, 0
      %p55 = por %p53, %p54
      %p56 = scmp.ne.s32.totalorder %s42, %s43
      %p57 = scmp.eq.s32.totalorder %s21, 3
      %p58 = por %p56, %p57
      %p60 = scmp.ne.s32.totalorder %s43, %s59
      %p61 = scmp.eq.s32.totalorder %s21, 0
      %p62 = por %p60, %p61
      %s63 = ssub.s32 %s23, %s30
      %p64 = scmp.eq.s32.totalorder %s63, 0
      %s66 = sadd.s32 %s65, 1
      %s67 = scalar_select %p64, %s65, %s66
      %p70 = pneg %p64
      %p71 = scmp.eq.s32.totalorder %s15, 3
      %p72 = por %p70, %p71
      %p73 = scmp.ne.s32.totalorder %s65, %s68
      %p74 = scmp.eq.s32.totalorder %s15, 0
      %p75 = por %p73, %p74
      %p76 = scmp.ne.s32.totalorder %s65, %s68
      %p77 = scmp.eq.s32.totalorder %s20, 3
      %p78 = por %p76, %p77
      %p79 = scmp.ne.s32.totalorder %s68, %s69
      %p80 = scmp.eq.s32.totalorder %s20, 0
      %p81 = por %p79, %p80
      %p82 = scmp.ne.s32.totalorder %s68, %s69
      %p83 = scmp.eq.s32.totalorder %s21, 3
      %p84 = por %p82, %p83
      %p86 = scmp.ne.s32.totalorder %s69, %s85
      %p87 = scmp.eq.s32.totalorder %s21, 0
      %p88 = por %p86, %p87
      %s89 = ssub.s32 %s23, %s30
      %p90 = scmp.eq.s32.totalorder %s89, 0
      %s92 = sadd.s32 %s91, 1
      %s93 = scalar_select %p90, %s91, %s92
      %p96 = pneg %p90
      %p97 = scmp.eq.s32.totalorder %s15, 3
      %p98 = por %p96, %p97
      %p99 = scmp.ne.s32.totalorder %s91, %s94
      %p100 = scmp.eq.s32.totalorder %s15, 0
      %p101 = por %p99, %p100
      %p102 = scmp.ne.s32.totalorder %s91, %s94
      %p103 = scmp.eq.s32.totalorder %s20, 3
      %p104 = por %p102, %p103
      %p105 = scmp.ne.s32.totalorder %s94, %s95
      %p106 = scmp.eq.s32.totalorder %s20, 0
      %p107 = por %p105, %p106
      %p108 = scmp.ne.s32.totalorder %s94, %s95
      %p109 = scmp.eq.s32.totalorder %s21, 3
      %p110 = por %p108, %p109
      %p112 = scmp.ne.s32.totalorder %s95, %s111
      %p113 = scmp.eq.s32.totalorder %s21, 0
      %p114 = por %p112, %p113
      %s115 = ssub.s32 %s22, %s34
      %s116 = ssub.s32 %s23, %s30
      %s117 = sor.u32 %s115, %s116
      %p118 = scmp.eq.s32.totalorder %s117, 0
      %s120 = sadd.s32 %s119, 1
      %s121 = scalar_select %p118, %s119, %s120
      %p124 = pneg %p118
      %p125 = scmp.eq.s32.totalorder %s15, 3
      %p126 = por %p124, %p125
      %p127 = scmp.ne.s32.totalorder %s119, %s122
      %p128 = scmp.eq.s32.totalorder %s15, 0
      %p129 = por %p127, %p128
      %p130 = scmp.ne.s32.totalorder %s119, %s122
      %p131 = scmp.eq.s32.totalorder %s20, 3
      %p132 = por %p130, %p131
      %p133 = scmp.ne.s32.totalorder %s122, %s123
      %p134 = scmp.eq.s32.totalorder %s20, 0
      %p135 = por %p133, %p134
      %p136 = scmp.ne.s32.totalorder %s122, %s123
      %p137 = scmp.eq.s32.totalorder %s21, 3
      %p138 = por %p136, %p137
      %p140 = scmp.ne.s32.totalorder %s123, %s139
      %p141 = scmp.eq.s32.totalorder %s21, 0
      %p142 = por %p140, %p141
      %p143 = scmp.le.s32.totalorder 1, %s15
      %p144 = scmp.lt.s32.totalorder %s15, 5
      %p145 = pnand %p143, %p144
      %p146 = pneg %p145
      // Predicated region
      $region9: #{tpu_custom_call.1} parent=5 // pred_check
        _
      $region10: #{tpu_custom_call.1} parent=5 // pred_check_branch
        %148 = sbr.rel (%p145) target = $region12
      $region11: #{tpu_custom_call.1} parent=5 // pred_region
        %s149 = ssub.s32 %s15, 1
      $region12: #{tpu_custom_call.1} parent=5 // pred_fallthru
        _
      %p150 = scmp.lt.s32.totalorder %s15, 4
      // Predicated region
      $region13: #{tpu_custom_call.1} parent=5 // pred_check
        %p151 = pneg %p150
      $region14: #{tpu_custom_call.1} parent=5 // pred_check_branch
        %153 = sbr.rel (%p151) target = $region16
      $region15: #{tpu_custom_call.1} parent=5 // pred_region
        // Predicated region
        $region17: #{tpu_custom_call.1} parent=15 // pred_check
          %p154 = pneg %p49
        $region18: #{tpu_custom_call.1} parent=15 // pred_check_branch
          %156 = sbr.rel (%p154) target = $region20
        $region19: #{tpu_custom_call.1} parent=15 // pred_region
          %s157 = sand.u32 %s39, 1
          %s158 = scalar_lea.sflag [#allocation3], %s157
          %s159 = sand.u32 %s39, 1
          %s160 = smul.addr %s159, 16
          %s161 = scalar_lea.vmem [#allocation2], %s160
          %s163 = ssub.s32 256, 256
          %164 = vsyncadd %s158, %s163
          %s165 = smul.addr %s23, 2
          %s166 = smul.addr %s22, 4
          %s167 = sadd.s32 %s165, %s166
          %s168 = smul.addr %s167, 128
          %s169 = scalar_lea.hbm %s0, %s168
          %s171 = sshll.u32 %s161, 4
          %s172 = int_to_ptr.vmem [resolvable:$true] %s171
          %174 = dma.hbm_to_vmem [thread:$0]  %s169, 256, %s172, %s158
        $region20: #{tpu_custom_call.1} parent=15 // pred_fallthru
          _
        // Predicated region
        $region21: #{tpu_custom_call.1} parent=15 // pred_check
          %p175 = pneg %p75
        $region22: #{tpu_custom_call.1} parent=15 // pred_check_branch
          %177 = sbr.rel (%p175) target = $region24
        $region23: #{tpu_custom_call.1} parent=15 // pred_region
          %p178 = scmp.lt.s32.totalorder %s23, 1
          %s179 = scalar_select %p178, %s23, 1
          %s180 = smul.addr %s179, 8
          %s181 = scalar_lea.vmem %s1, %s180
        $region24: #{tpu_custom_call.1} parent=15 // pred_fallthru
          _
        // Predicated region
        $region25: #{tpu_custom_call.1} parent=15 // pred_check
          %p182 = pneg %p101
        $region26: #{tpu_custom_call.1} parent=15 // pred_check_branch
          %184 = sbr.rel (%p182) target = $region28
        $region27: #{tpu_custom_call.1} parent=15 // pred_region
          %p185 = scmp.lt.s32.totalorder %s23, 1
          %s186 = scalar_select %p185, %s23, 1
          %s187 = smul.addr %s186, 8
          %s188 = scalar_lea.vmem %s2, %s187
        $region28: #{tpu_custom_call.1} parent=15 // pred_fallthru
          _
      $region16: #{tpu_custom_call.1} parent=5 // pred_fallthru
        _
      %p189 = scmp.le.s32.totalorder 1, %s15
      %p190 = scmp.lt.s32.totalorder %s15, 5
      %p191 = pnand %p189, %p190
      %p192 = pneg %p191
      // Predicated region
      $region29: #{tpu_custom_call.1} parent=5 // pred_check
        _
      $region30: #{tpu_custom_call.1} parent=5 // pred_check_branch
        %194 = sbr.rel (%p191) target = $region32
      $region31: #{tpu_custom_call.1} parent=5 // pred_region
        %s195 = ssub.s32 %s15, 1
        %s196 = sand.u32 %s42, 1
        %s197 = scalar_lea.sflag [#allocation3], %s196
        %s198 = sand.u32 %s42, 1
        %s199 = smul.addr %s198, 16
        %s200 = scalar_lea.vmem [#allocation2], %s199
        // Predicated region
        $region33: #{tpu_custom_call.1} parent=31 // pred_check
          %p201 = pneg %p55
        $region34: #{tpu_custom_call.1} parent=31 // pred_check_branch
          %203 = sbr.rel (%p201) target = $region36
        $region35: #{tpu_custom_call.1} parent=31 // pred_region
          %204 = dma.done %s197, 256
        $region36: #{tpu_custom_call.1} parent=31 // pred_fallthru
          _
        %s205 = sand.u32 %s42, 1
        %s206 = scalar_lea.sflag [#allocation3], %s205
        %s207 = sand.u32 %s42, 1
        %s208 = smul.addr %s207, 16
        %s209 = scalar_lea.vmem [#allocation2], %s208
        %p210 = pneg %p55
        %p211 = pneg %p52
        %p212 = scmp.lt.s32.totalorder %s25, 1
        %s213 = scalar_select %p212, %s25, 1
        %s214 = smul.addr %s213, 8
        %s215 = scalar_lea.vmem %s1, %s214
        %p216 = pneg %p81
        %p217 = pneg %p78
        %p218 = scmp.lt.s32.totalorder %s25, 1
        %s219 = scalar_select %p218, %s25, 1
        %s220 = smul.addr %s219, 8
        %s221 = scalar_lea.vmem %s2, %s220
        %p222 = pneg %p107
        %p223 = pneg %p104
        %p224 = pneg %p135
        %p225 = pneg %p132
        %s226 = sand.u32 %s122, 1
        %s227 = scalar_lea.sflag [#allocation4], %s226
        %s228 = sand.u32 %s122, 1
        %s229 = smul.addr %s228, 16
        %s230 = scalar_lea.vmem [#allocation5], %s229
        %p231 = scmp.lt.s32.totalorder %s25, 1
        %s232 = scalar_select %p231, %s25, 1
        %s233 = smul.addr %s232, 8
        %s234 = scalar_lea.vmem %s1, %s233
        %p235 = scmp.lt.s32.totalorder %s25, 1
        %s236 = scalar_select %p235, %s25, 1
        %s237 = smul.addr %s236, 8
        %s238 = scalar_lea.vmem %s2, %s237
        %v239 = vld [vmem:[%s200] sm:$0xff]
        %v240 = vld [vmem:[%s200 + $0x8] sm:$0xff]
        %v241 = vadd.f32 %v239, %v240
        %242 = vadd.xlane.f32.xlu0 %v241
        %v243 = vpop.xlane.xlu0 %242
        %v244 = vmul.f32 %v239, %v239
        %v245 = vmul.f32 %v240, %v240
        %v246 = vadd.f32 %v244, %v245
        %247 = vadd.xlane.f32.xlu0 %v246
        %v248 = vpop.xlane.xlu0 %247
        %v249 = vlaneseq
        %v250 = vshrl.u32 %v249, 7
        %vm251 = vcmask 1041408
        %v252 = vsel %vm251, %v243, 0.0
        %v253 = vrot.slane %v252, 4
        %v254 = vadd.f32 %v252, %v253
        %v255 = vrot.slane %v254, 2
        %v256 = vadd.f32 %v254, %v255
        %v257 = vrot.slane %v256, 1
        %v258 = vadd.f32 %v256, %v257
        %v259 = vmul.f32 %v258, 0.001953125
        %v260 = vsel %vm251, %v248, 0.0
        %v261 = vrot.slane %v260, 4
        %v262 = vadd.f32 %v260, %v261
        %v263 = vrot.slane %v262, 2
        %v264 = vadd.f32 %v262, %v263
        %v265 = vrot.slane %v264, 1
        %v266 = vadd.f32 %v264, %v265
        %v267 = vmul.f32 %v266, 0.001953125
        %v268 = vmul.f32 %v259, %v259
        %v269 = vsub.f32 %v267, %v268
        %v270 = vmax.f32 %v269, 0.0
        %v271 = vadd.f32 %v270, 1e-06
        %v272 = vrsqrt.pop %v271
        %vm273 = vcmp.ge.s32.totalorder %v250, 0
        %vm274 = vcmp.lt.s32.totalorder %v250, 2
        %vm275 = vmand %vm273, %vm274
        %v276 = vsel %vm275, %v259, 0.0
        %v277 = vsel %vm275, %v272, 0.0
        %v279 = vrot.slane %v243, 2
        %v281 = vsel %vm251, %v279, 0.0
        %v282 = vrot.slane %v281, 4
        %v283 = vadd.f32 %v281, %v282
        %v284 = vrot.slane %v283, 2
        %v285 = vadd.f32 %v283, %v284
        %v286 = vrot.slane %v285, 1
        %v287 = vadd.f32 %v285, %v286
        %v288 = vmul.f32 %v287, 0.001953125
        %v290 = vrot.slane %v248, 2
        %v292 = vsel %vm251, %v290, 0.0
        %v293 = vrot.slane %v292, 4
        %v294 = vadd.f32 %v292, %v293
        %v295 = vrot.slane %v294, 2
        %v296 = vadd.f32 %v294, %v295
        %v297 = vrot.slane %v296, 1
        %v298 = vadd.f32 %v296, %v297
        %v299 = vmul.f32 %v298, 0.001953125
        %v300 = vmul.f32 %v288, %v288
        %v301 = vsub.f32 %v299, %v300
        %v302 = vmax.f32 %v301, 0.0
        %v303 = vadd.f32 %v302, 1e-06
        %v304 = vrsqrt.pop %v303
        %vm305 = vcmp.ge.s32.totalorder %v250, 2
        %vm306 = vcmp.lt.s32.totalorder %v250, 4
        %vm307 = vmand %vm305, %vm306
        %v308 = vsel %vm307, %v288, %v276
        %v309 = vsel %vm307, %v304, %v277
        %v310 = vrot.slane %v243, 4
        %v312 = vsel %vm251, %v310, 0.0
        %v313 = vrot.slane %v312, 4
        %v314 = vadd.f32 %v312, %v313
        %v315 = vrot.slane %v314, 2
        %v316 = vadd.f32 %v314, %v315
        %v317 = vrot.slane %v316, 1
        %v318 = vadd.f32 %v316, %v317
        %v319 = vmul.f32 %v318, 0.001953125
        %v320 = vrot.slane %v248, 4
        %v322 = vsel %vm251, %v320, 0.0
        %v323 = vrot.slane %v322, 4
        %v324 = vadd.f32 %v322, %v323
        %v325 = vrot.slane %v324, 2
        %v326 = vadd.f32 %v324, %v325
        %v327 = vrot.slane %v326, 1
        %v328 = vadd.f32 %v326, %v327
        %v329 = vmul.f32 %v328, 0.001953125
        %v330 = vmul.f32 %v319, %v319
        %v331 = vsub.f32 %v329, %v330
        %v332 = vmax.f32 %v331, 0.0
        %v333 = vadd.f32 %v332, 1e-06
        %v334 = vrsqrt.pop %v333
        %vm335 = vcmp.ge.s32.totalorder %v250, 4
        %vm336 = vcmp.lt.s32.totalorder %v250, 6
        %vm337 = vmand %vm335, %vm336
        %v338 = vsel %vm337, %v319, %v308
        %v339 = vsel %vm337, %v334, %v309
        %v340 = vrot.slane %v243, 6
        %v342 = vsel %vm251, %v340, 0.0
        %v343 = vrot.slane %v342, 4
        %v344 = vadd.f32 %v342, %v343
        %v345 = vrot.slane %v344, 2
        %v346 = vadd.f32 %v344, %v345
        %v347 = vrot.slane %v346, 1
        %v348 = vadd.f32 %v346, %v347
        %v349 = vmul.f32 %v348, 0.001953125
        %v350 = vrot.slane %v248, 6
        %v352 = vsel %vm251, %v350, 0.0
        %v353 = vrot.slane %v352, 4
        %v354 = vadd.f32 %v352, %v353
        %v355 = vrot.slane %v354, 2
        %v356 = vadd.f32 %v354, %v355
        %v357 = vrot.slane %v356, 1
        %v358 = vadd.f32 %v356, %v357
        %v359 = vmul.f32 %v358, 0.001953125
        %v360 = vmul.f32 %v349, %v349
        %v361 = vsub.f32 %v359, %v360
        %v362 = vmax.f32 %v361, 0.0
        %v363 = vadd.f32 %v362, 1e-06
        %v364 = vrsqrt.pop %v363
        %vm365 = vcmp.ge.s32.totalorder %v250, 6
        %vm366 = vcmp.lt.s32.totalorder %v250, 8
        %vm367 = vmand %vm365, %vm366
        %v368 = vsel %vm367, %v349, %v338
        %v369 = vsel %vm367, %v364, %v339
        %v370 = vld [vmem:[%s234] sm:$0xff]
        %v371 = vld [vmem:[%s238] sm:$0xff]
        %v372 = vmul.f32 %v370, %v369
        %v373 = vmul.f32 %v368, %v372
        %v374 = vsub.f32 %v371, %v373
        %376 = vset.pattern.permute.xlu0 0
        %377 = vperm.xlu0 %376, %v372
        %v378 = vpop.permute.xlu0 %377
        %v380 = vmul.f32 %v239, %v378
        %v381 = vmul.f32 %v240, %v378
        %383 = vset.pattern.permute.xlu0 0
        %384 = vperm.xlu0 %383, %v374
        %v385 = vpop.permute.xlu0 %384
        %v387 = vadd.f32 %v380, %v385
        %v388 = vadd.f32 %v381, %v385
        %389 = vst [vmem:[%s230] sm:$0xff] %v387
        %390 = vst [vmem:[%s230 + $0x8] sm:$0xff] %v388
        %s391 = sand.u32 %s122, 1
        %s392 = scalar_lea.sflag [#allocation4], %s391
        %s393 = sand.u32 %s122, 1
        %s394 = smul.addr %s393, 16
        %s395 = scalar_lea.vmem [#allocation5], %s394
        // Predicated region
        $region37: #{tpu_custom_call.1} parent=31 // pred_check
          %p396 = pneg %p132
        $region38: #{tpu_custom_call.1} parent=31 // pred_check_branch
          %398 = sbr.rel (%p396) target = $region40
        $region39: #{tpu_custom_call.1} parent=31 // pred_region
          %s400 = ssub.s32 256, 256
          %401 = vsyncadd %s392, %s400
          %s402 = smul.addr %s25, 2
          %s403 = smul.addr %s24, 4
          %s404 = sadd.s32 %s402, %s403
          %s405 = smul.addr %s404, 128
          %s406 = scalar_lea.hbm %s3, %s405
          %s408 = sshll.u32 %s395, 4
          %s409 = int_to_ptr.vmem [resolvable:$true] %s408
          %411 = dma.vmem_to_hbm [thread:$0]  %s409, 256, %s406, %s392
        $region40: #{tpu_custom_call.1} parent=31 // pred_fallthru
          _
      $region32: #{tpu_custom_call.1} parent=5 // pred_fallthru
        _
      %p412 = scmp.le.s32.totalorder 2, %s15
      // Predicated region
      $region41: #{tpu_custom_call.1} parent=5 // pred_check
        %p413 = pneg %p412
      $region42: #{tpu_custom_call.1} parent=5 // pred_check_branch
        %415 = sbr.rel (%p413) target = $region44
      $region43: #{tpu_custom_call.1} parent=5 // pred_region
        %s416 = ssub.s32 %s15, 2
        // Predicated region
        $region45: #{tpu_custom_call.1} parent=43 // pred_check
          %p417 = pneg %p138
        $region46: #{tpu_custom_call.1} parent=43 // pred_check_branch
          %419 = sbr.rel (%p417) target = $region48
        $region47: #{tpu_custom_call.1} parent=43 // pred_region
          %s420 = sand.u32 %s123, 1
          %s421 = scalar_lea.sflag [#allocation4], %s420
          %s422 = sand.u32 %s123, 1
          %s423 = smul.addr %s422, 16
          %s424 = scalar_lea.vmem [#allocation5], %s423
          %425 = dma.done %s421, 256
        $region48: #{tpu_custom_call.1} parent=43 // pred_fallthru
          _
      $region44: #{tpu_custom_call.1} parent=5 // pred_fallthru
        _
    $region6: #{tpu_custom_call.1} parent=1 // loop_footer
      %s19 = sadd.s32 1, %s15
    $region7: #{tpu_custom_call.1} parent=1 // loop_footer_branch
      %14 = sbr.rel target = $region3
    $region8: #{tpu_custom_call.1} parent=1 // loop_exit
      _
    %426 = vsyncpa [#allocation3], 1
    %s427 = scalar_lea.sflag [#allocation3], 1
    %428 = vsyncpa %s427, 1
    %429 = vsyncpa [#allocation4], 1
    %s430 = scalar_lea.sflag [#allocation4], 1
    %431 = vsyncpa %s430, 1

</llo_original>
